<compile_context>
chip_gen: v7x
topology: tpu7x:2x2x1
jax: 0.10.0
libtpu: 0.0.40
codegen_flags: <defaults>
</compile_context>

<pallas_src>
import functools

import jax
import jax.numpy as jnp
from jax.experimental import pallas as pl
from jax.experimental.pallas import tpu as pltpu


def _ce_kernel(x_ref, t_ref, w_ref, o_ref, acc_ref, *,
               batch_size, tile_rows, tiles_per_slice, inv_divisor):
    j = pl.program_id(1)  # batch-tile index within this slice (reduction axis)

    # Zero the persistent per-row accumulator at the start of each slice.
    @pl.when(j == 0)
    def _():
        acc_ref[...] = jnp.zeros_like(acc_ref)

    x = x_ref[...].astype(jnp.float32)   # (tb, C) logits
    t = t_ref[...].astype(jnp.float32)   # (tb, C) soft targets
    w = w_ref[...].astype(jnp.float32)   # (1, C) class weights (broadcast over rows)

    # Numerically stable -log_softmax along the lane (class) axis.
    m = jnp.max(x, axis=-1, keepdims=True)
    shifted = x - m
    lse = jnp.log(jnp.sum(jnp.exp(shifted), axis=-1, keepdims=True))
    # weight * (-log_softmax) * target, all on the VPU (broadcast mul over rows).
    e = (lse - shifted) * t * w

    contrib = jnp.sum(e, axis=-1, keepdims=True)        # (tb, 1) lane reduce (XLU)

    # Mask rows past the real batch: the ragged last tile and any overflow
    # tiles of the second slice (which re-read the last valid tile) contribute
    # exactly zero.  All ops above are row-local, so garbage tail rows cannot
    # contaminate valid rows.
    tile_lin = pl.program_id(0) * tiles_per_slice + j
    row_ids = (jax.lax.broadcasted_iota(jnp.int32, (tile_rows, 1), 0)
               + tile_lin * tile_rows)
    contrib = jnp.where(row_ids < batch_size, contrib, 0.0)

    acc_ref[...] += contrib

    # Finalize: reduce this slice's per-row partials, apply 1/divisor once,
    # and write a lane-dense (unmasked-vst) output block for this slice.
    @pl.when(j == tiles_per_slice - 1)
    def _():
        total = jnp.sum(acc_ref[...]) * inv_divisor
        o_ref[...] = jnp.full(o_ref.shape, total, dtype=jnp.float32)


def cross_entropy_loss(inputs, target, weight, size_average=True):
    """Pallas TPU implementation of the reference CrossEntropyLoss.forward."""
    assert inputs.ndim == 2
    assert target.ndim == 2
    batch_size, output_dim = inputs.shape
    assert target.shape == (batch_size, output_dim)
    assert weight.shape == (output_dim,)

    itemsize = jnp.dtype(inputs.dtype).itemsize
    c_lanes = ((output_dim + 127) // 128) * 128   # VMEM lane footprint of one row

    # ---- generation-aware sizing ------------------------------------------
    try:
        vmem_cap = int(getattr(pltpu.get_tpu_info(), "vmem_capacity_bytes"))
    except Exception:
        vmem_cap = 64 << 20                       # conservative (v7x) fallback
    # Bigger streaming tiles on 128 MiB parts (v5e/v6e); leaner on 64 MiB v7x.
    target_block_bytes = (8 << 20) if vmem_cap >= (100 << 20) else (6 << 20)

    # ---- batch tile (sublanes) ---------------------------------------------
    if batch_size < 8:
        tb = batch_size                           # block == full dim (allowed)
    else:
        tb = (target_block_bytes // (c_lanes * itemsize)) // 8 * 8
        tb = int(max(8, min(tb, ((batch_size + 7) // 8) * 8)))
    num_tiles = (batch_size + tb - 1) // tb

    # Two parallel slices -> on v7x each TensorCore streams half the tiles.
    num_slices = 2 if num_tiles >= 2 else 1
    tiles_per_slice = (num_tiles + num_slices - 1) // num_slices

    inv_divisor = (1.0 / float(batch_size)) if size_average else 1.0
    kernel = functools.partial(
        _ce_kernel, batch_size=batch_size, tile_rows=tb,
        tiles_per_slice=tiles_per_slice, inv_divisor=inv_divisor)

    def xt_index_map(i, j):
        # Overflow tiles (only when num_tiles is odd and split across 2 slices)
        # re-read the last valid tile; their rows are fully masked in-kernel.
        return (jnp.minimum(i * tiles_per_slice + j, num_tiles - 1), 0)

    w_row = jnp.reshape(weight, (1, output_dim))  # metadata-only reshape

    # ---- VMEM budget ---------------------------------------------------------
    # 2 streamed inputs x 2 buffers x block + sublane-padded weight (x2 bufs)
    # + lane-padded (tb,1) accumulator + output blocks + slack; capped at 75%
    # of physical VMEM so it can never exceed the chip (e.g. 48 MiB on v7x).
    block_bytes = tb * c_lanes * itemsize
    w_bytes = 2 * 8 * c_lanes * jnp.dtype(weight.dtype).itemsize
    acc_bytes = ((tb + 7) // 8 * 8) * 128 * 4
    out_bytes = 2 * 8 * 128 * 4
    need = 4 * block_bytes + w_bytes + acc_bytes + out_bytes + (2 << 20)
    vmem_limit = int(min(max(need, 16 << 20), vmem_cap * 3 // 4))

    out = pl.pallas_call(
        kernel,
        out_shape=jax.ShapeDtypeStruct((num_slices, 8, 128), jnp.float32),
        grid=(num_slices, tiles_per_slice),
        in_specs=[
            pl.BlockSpec((tb, output_dim), xt_index_map),
            pl.BlockSpec((tb, output_dim), xt_index_map),
            pl.BlockSpec((1, output_dim), lambda i, j: (0, 0)),  # resident weight row
        ],
        out_specs=pl.BlockSpec((1, 8, 128), lambda i, j: (i, 0, 0)),
        scratch_shapes=[pltpu.VMEM((tb, 1), jnp.float32)],
        compiler_params=pltpu.CompilerParams(
            dimension_semantics=("parallel", "arbitrary"),
            vmem_limit_bytes=vmem_limit,
        ),
    )(inputs, target, w_row)

    # TODO(synk): for vocab-scale output_dim (where even a tb=8 block is tens
    # of MiB) add a class-tiled path with an online/two-pass logsumexp so the
    # per-tile VMEM footprint stays bounded on 64 MiB parts.
    return jnp.sum(out[:, 0, 0])


def _reference(inputs, target, weight, size_average=True):
    # Pure-JAX reference for sanity checking.
    log_sm = jax.nn.log_softmax(inputs.astype(jnp.float32), axis=-1)
    tmp = -log_sm * target.astype(jnp.float32)
    tmp_weighted = jnp.reshape(weight, (1, -1)).astype(jnp.float32) * tmp
    loss = jnp.sum(tmp_weighted)
    if size_average:
        loss = loss / inputs.shape[0]
    return loss


if __name__ == "__main__":
    key = jax.random.PRNGKey(0)
    k1, k2 = jax.random.split(key)

    B, C = 8, 32  # small shapes consistent with a 2-D (batch, num_classes) input

    inputs = jax.random.normal(k1, (B, C), dtype=jnp.float32)
    # Soft targets: a valid probability distribution per row.
    target = jax.nn.softmax(jax.random.normal(k2, (B, C), dtype=jnp.float32), axis=-1)
    # Deterministic per-class weights (module stores `self.weight` of shape (C,)).
    weight = jnp.linspace(0.5, 1.5, C, dtype=jnp.float32)

    loss = cross_entropy_loss(inputs, target, weight, size_average=True)
    loss = jax.block_until_ready(loss)

    ref = _reference(inputs, target, weight, size_average=True)
    assert jnp.allclose(loss, ref, rtol=1e-5, atol=1e-5), (loss, ref)

    # Also exercise size_average=False path once.
    loss2 = jax.block_until_ready(
        cross_entropy_loss(inputs, target, weight, size_average=False))
    ref2 = _reference(inputs, target, weight, size_average=False)
    assert jnp.allclose(loss2, ref2, rtol=1e-5, atol=1e-5), (loss2, ref2)

    print("KERNEL_OK")
</pallas_src>

<mosaic_0001>
module attributes {stable_mosaic.version = 11 : i64} {
  func.func @_ce_kernel(%arg0: i32, %arg1: i32, %arg2: memref<8x32xf32, #tpu.memory_space<vmem>>, %arg3: memref<8x32xf32, #tpu.memory_space<vmem>>, %arg4: memref<1x32xf32, #tpu.memory_space<vmem>>, %arg5: memref<1x8x128xf32, #tpu.memory_space<vmem>>, %arg6: memref<8x1xf32, #tpu.memory_space<vmem>>) attributes {dimension_semantics = [#tpu.dimension_semantics<parallel>, #tpu.dimension_semantics<arbitrary>], iteration_bounds = array<i64: 1, 1>, scalar_prefetch = 0 : i64, scratch_operands = 1 : i64, tpu.core_type = #tpu.core_type<tc>, window_params = [{transform_indices = @transform_0, window_bounds = array<i64: 8, 32>}, {transform_indices = @transform_1, window_bounds = array<i64: 8, 32>}, {pipeline_mode = #tpu.pipeline_mode<synchronous>, transform_indices = @transform_2, window_bounds = array<i64: 1, 32>}, {transform_indices = @transform_3, window_bounds = array<i64: 1, 8, 128>}]} {
    %c0_i32 = arith.constant 0 : i32
    %0 = arith.cmpi eq, %arg1, %c0_i32 : i32
    %1 = arith.extui %0 : i1 to i32
    %c0_i32_0 = arith.constant 0 : i32
    %2 = arith.cmpi ne, %1, %c0_i32_0 : i32
    scf.if %2 {
      %cst_16 = arith.constant 0.000000e+00 : f32
      %37 = vector.broadcast %cst_16 : f32 to vector<8x1xf32>
      %c0_17 = arith.constant 0 : index
      %c0_18 = arith.constant 0 : index
      %38 = vector.load %arg6[%c0_17, %c0_18] : memref<8x1xf32, #tpu.memory_space<vmem>>, vector<8x1xf32>
      tpu.vector_store %arg6[%c0_17, %c0_18], %37 {strides = array<i32>} : memref<8x1xf32, #tpu.memory_space<vmem>>, vector<8x1xf32>,
    } else {
    }
    %c0 = arith.constant 0 : index
    %c0_1 = arith.constant 0 : index
    %3 = vector.load %arg2[%c0, %c0_1] : memref<8x32xf32, #tpu.memory_space<vmem>>, vector<8x32xf32>
    %c0_2 = arith.constant 0 : index
    %c0_3 = arith.constant 0 : index
    %4 = vector.load %arg3[%c0_2, %c0_3] : memref<8x32xf32, #tpu.memory_space<vmem>>, vector<8x32xf32>
    %c0_4 = arith.constant 0 : index
    %c0_5 = arith.constant 0 : index
    %5 = vector.load %arg4[%c0_4, %c0_5] : memref<1x32xf32, #tpu.memory_space<vmem>>, vector<1x32xf32>
    %cst = arith.constant dense<0xFF800000> : vector<8xf32>
    %6 = vector.multi_reduction <maximumf>, %3, %cst [1] : vector<8x32xf32> to vector<8xf32>
    %7 = vector.shape_cast %6 : vector<8xf32> to vector<8x1xf32>
    %8 = vector.broadcast %7 : vector<8x1xf32> to vector<8x32xf32>
    %9 = arith.subf %3, %8 : vector<8x32xf32>
    %10 = math.exp %9 : vector<8x32xf32>
    %cst_6 = arith.constant dense<0.000000e+00> : vector<8xf32>
    %11 = vector.multi_reduction <add>, %10, %cst_6 [1] : vector<8x32xf32> to vector<8xf32>
    %12 = vector.shape_cast %11 : vector<8xf32> to vector<8x1xf32>
    %13 = math.log %12 : vector<8x1xf32>
    %14 = vector.broadcast %13 : vector<8x1xf32> to vector<8x32xf32>
    %15 = arith.subf %14, %9 : vector<8x32xf32>
    %16 = arith.mulf %15, %4 : vector<8x32xf32>
    %17 = vector.broadcast %5 : vector<1x32xf32> to vector<8x32xf32>
    %18 = arith.mulf %16, %17 : vector<8x32xf32>
    %cst_7 = arith.constant dense<0.000000e+00> : vector<8xf32>
    %19 = vector.multi_reduction <add>, %18, %cst_7 [1] : vector<8x32xf32> to vector<8xf32>
    %20 = vector.shape_cast %19 : vector<8xf32> to vector<8x1xf32>
    %c1_i32 = arith.constant 1 : i32
    %21 = arith.muli %arg0, %c1_i32 : i32
    %22 = arith.addi %21, %arg1 : i32
    %23 = tpu.iota {dimensions = array<i32: 0>} : vector<8x1xi32>
    %c8_i32 = arith.constant 8 : i32
    %24 = arith.muli %22, %c8_i32 : i32
    %25 = vector.broadcast %24 : i32 to vector<8x1xi32>
    %26 = arith.addi %23, %25 : vector<8x1xi32>
    %c8_i32_8 = arith.constant 8 : i32
    %27 = vector.broadcast %c8_i32_8 : i32 to vector<8x1xi32>
    %28 = arith.cmpi slt, %26, %27 : vector<8x1xi32>
    %cst_9 = arith.constant 0.000000e+00 : f32
    %29 = vector.broadcast %cst_9 : f32 to vector<8x1xf32>
    %30 = arith.select %28, %20, %29 : vector<8x1xi1>, vector<8x1xf32>
    %c0_10 = arith.constant 0 : index
    %c0_11 = arith.constant 0 : index
    %31 = vector.load %arg6[%c0_10, %c0_11] : memref<8x1xf32, #tpu.memory_space<vmem>>, vector<8x1xf32>
    %32 = arith.addf %31, %30 : vector<8x1xf32>
    %c0_12 = arith.constant 0 : index
    %c0_13 = arith.constant 0 : index
    %33 = vector.load %arg6[%c0_12, %c0_13] : memref<8x1xf32, #tpu.memory_space<vmem>>, vector<8x1xf32>
    tpu.vector_store %arg6[%c0_12, %c0_13], %32 {strides = array<i32>} : memref<8x1xf32, #tpu.memory_space<vmem>>, vector<8x1xf32>,
    %c0_i32_14 = arith.constant 0 : i32
    %34 = arith.cmpi eq, %arg1, %c0_i32_14 : i32
    %35 = arith.extui %34 : i1 to i32
    %c0_i32_15 = arith.constant 0 : i32
    %36 = arith.cmpi ne, %35, %c0_i32_15 : i32
    scf.if %36 {
      %c0_16 = arith.constant 0 : index
      %c0_17 = arith.constant 0 : index
      %37 = vector.load %arg6[%c0_16, %c0_17] : memref<8x1xf32, #tpu.memory_space<vmem>>, vector<8x1xf32>
      %38 = vector.shape_cast %37 : vector<8x1xf32> to vector<1x8x1xf32>
      %cst_18 = arith.constant dense<0.000000e+00> : vector<1xf32>
      %39 = vector.multi_reduction <add>, %38, %cst_18 [1, 2] : vector<1x8x1xf32> to vector<1xf32>
      %40 = vector.shape_cast %39 : vector<1xf32> to vector<1x1x1xf32>
      %41 = vector.extract %40[0, 0, 0] : f32 from vector<1x1x1xf32>
      %cst_19 = arith.constant 1.250000e-01 : f32
      %42 = arith.mulf %41, %cst_19 : f32
      %43 = vector.broadcast %42 : f32 to vector<1x8x128xf32>
      %c0_20 = arith.constant 0 : index
      %c0_21 = arith.constant 0 : index
      %c0_22 = arith.constant 0 : index
      %44 = vector.load %arg5[%c0_20, %c0_21, %c0_22] : memref<1x8x128xf32, #tpu.memory_space<vmem>>, vector<1x8x128xf32>
      tpu.vector_store %arg5[%c0_20, %c0_21, %c0_22], %43 {strides = array<i32>} : memref<1x8x128xf32, #tpu.memory_space<vmem>>, vector<1x8x128xf32>,
    } else {
    }
    return
  }
  func.func @transform_0(%arg0: i32, %arg1: i32) -> (i32, i32) {
    %c1_i32 = arith.constant 1 : i32
    %0 = arith.muli %arg0, %c1_i32 : i32
    %1 = arith.addi %0, %arg1 : i32
    %c0_i32 = arith.constant 0 : i32
    %2 = arith.minsi %1, %c0_i32 : i32
    %c0_i32_0 = arith.constant 0 : i32
    %c0_i32_1 = arith.constant 0 : i32
    return %2, %c0_i32_0 : i32, i32
  }
  func.func @transform_1(%arg0: i32, %arg1: i32) -> (i32, i32) {
    %c1_i32 = arith.constant 1 : i32
    %0 = arith.muli %arg0, %c1_i32 : i32
    %1 = arith.addi %0, %arg1 : i32
    %c0_i32 = arith.constant 0 : i32
    %2 = arith.minsi %1, %c0_i32 : i32
    %c0_i32_0 = arith.constant 0 : i32
    %c0_i32_1 = arith.constant 0 : i32
    return %2, %c0_i32_0 : i32, i32
  }
  func.func @transform_2(%arg0: i32, %arg1: i32) -> (i32, i32) {
    %c0_i32 = arith.constant 0 : i32
    %c0_i32_0 = arith.constant 0 : i32
    %c0_i32_1 = arith.constant 0 : i32
    return %c0_i32, %c0_i32_0 : i32, i32
  }
  func.func @transform_3(%arg0: i32, %arg1: i32) -> (i32, i32, i32) {
    %c0_i32 = arith.constant 0 : i32
    %c0_i32_0 = arith.constant 0 : i32
    %c0_i32_1 = arith.constant 0 : i32
    return %arg0, %c0_i32, %c0_i32_0 : i32, i32, i32
  }
}

</mosaic_0001>

<llo_original>
// kernel: tpu_custom_call.1
$region0: #{tpu_custom_call.1}
  #allocation0 [shape = 'u32[]', space=smem, size = 0x4, offset = 0x4, fixed_abs, tag = 'smem constant byte address 0x4 - core index']
  #allocation1 [shape = 'u32[144,128]{1,0:T(1,128)}', space=vmem, size = 0x12000, scoped, tag = 'internal scratch']
  #allocation2 [shape = 'f32[8,1]{1,0:T(8,128)}', space=vmem, size = 0x1000, scoped, tag = 'scratch operand']
  %s0 = inlined_call_operand.hbm [shape: f32[8,32], index: 0, kind: input, shape index: {}]
  %s1 = inlined_call_operand.hbm [shape: f32[8,32], index: 1, kind: input, shape index: {}]
  %s2 = inlined_call_operand.vmem [shape: f32[1,32], index: 2, kind: input, shape index: {}]
  %s3 = inlined_call_operand.hbm [shape: f32[1,8,128], index: 3, kind: output, shape index: {}]
  %s4 = sld [smem:[#allocation0]]
  $region38: #{tpu_custom_call.1} parent=0
    _
  %s6 = ssub.s32 1, %s4
  %s7 = scalar_select 0, %s6, %s4
  $region1: #{tpu_custom_call.1} parent=0
    #allocation3 [shape = 'u8[4096]{0}', space=vmem, size = 0x1000, scoped, tag = 'input window, operand 0, single buffered']
    #allocation4 [shape = 's32[1]{0}', space=sflag, size = 0x4, scoped, tag = 'scoped memory for tpu_custom_call.1']
    #allocation5 [shape = 's32[1]{0}', space=sflag, size = 0x4, scoped, tag = 'scoped memory for tpu_custom_call.1']
    #allocation6 [shape = 'u8[4096]{0}', space=vmem, size = 0x1000, scoped, tag = 'input window, operand 1, single buffered']
    #allocation7 [shape = 's32[1]{0}', space=sflag, size = 0x4, scoped, tag = 'scoped memory for tpu_custom_call.1']
    #allocation8 [shape = 'u8[4096]{0}', space=vmem, size = 0x1000, scoped, tag = 'output window, operand 0, single buffered']
    %8 = vsyncpa [#allocation4], 0
    %9 = vsyncpa [#allocation7], 0
    %10 = vsyncpa [#allocation5], 0
    // Predicated region
    $region2: #{tpu_custom_call.1} parent=1 // pred_check
      _
    $region3: #{tpu_custom_call.1} parent=1 // pred_check_branch
      %12 = sbr.rel (0) target = $region5
    $region4: #{tpu_custom_call.1} parent=1 // pred_region
      %s13 = sadd.s32 0, 0
      %p14 = scmp.lt.s32.totalorder %s13, 0
      %s15 = scalar_select %p14, %s13, 0
      %s17 = ssub.s32 128, 128
      %18 = vsyncadd [#allocation4], %s17
      %s19 = smul.addr %s15, 128
      %s20 = scalar_lea.hbm %s0, %s19
      %s22 = sshll.u32 [#allocation3], 4
      %s23 = int_to_ptr.vmem [resolvable:$true] %s22
      %25 = dma.hbm_to_vmem [thread:$0]  %s20, 128, %s23, [#allocation4]
    $region5: #{tpu_custom_call.1} parent=1 // pred_fallthru
      _
    // Predicated region
    $region6: #{tpu_custom_call.1} parent=1 // pred_check
      _
    $region7: #{tpu_custom_call.1} parent=1 // pred_check_branch
      %27 = sbr.rel (0) target = $region9
    $region8: #{tpu_custom_call.1} parent=1 // pred_region
      %s28 = sadd.s32 0, 0
      %p29 = scmp.lt.s32.totalorder %s28, 0
      %s30 = scalar_select %p29, %s28, 0
      %s32 = ssub.s32 128, 128
      %33 = vsyncadd [#allocation7], %s32
      %s34 = smul.addr %s30, 128
      %s35 = scalar_lea.hbm %s1, %s34
      %s37 = sshll.u32 [#allocation6], 4
      %s38 = int_to_ptr.vmem [resolvable:$true] %s37
      %40 = dma.hbm_to_vmem [thread:$0]  %s35, 128, %s38, [#allocation7]
    $region9: #{tpu_custom_call.1} parent=1 // pred_fallthru
      _
    // Predicated region
    $region10: #{tpu_custom_call.1} parent=1 // pred_check
      _
    $region11: #{tpu_custom_call.1} parent=1 // pred_check_branch
      %42 = sbr.rel (0) target = $region13
    $region12: #{tpu_custom_call.1} parent=1 // pred_region
      _
    $region13: #{tpu_custom_call.1} parent=1 // pred_fallthru
      _
    // Predicated region
    $region14: #{tpu_custom_call.1} parent=1 // pred_check
      _
    $region15: #{tpu_custom_call.1} parent=1 // pred_check_branch
      %44 = sbr.rel (0) target = $region17
    $region16: #{tpu_custom_call.1} parent=1 // pred_region
      %45 = dma.done [#allocation4], 128
    $region17: #{tpu_custom_call.1} parent=1 // pred_fallthru
      _
    // Predicated region
    $region18: #{tpu_custom_call.1} parent=1 // pred_check
      _
    $region19: #{tpu_custom_call.1} parent=1 // pred_check_branch
      %47 = sbr.rel (0) target = $region21
    $region20: #{tpu_custom_call.1} parent=1 // pred_region
      %48 = dma.done [#allocation7], 128
    $region21: #{tpu_custom_call.1} parent=1 // pred_fallthru
      _
    %s49 = sadd.s32 0, 0
    %p50 = scmp.lt.s32.totalorder %s49, 0
    %s51 = scalar_select %p50, %s49, 0
    %s52 = sadd.s32 0, 0
    %p53 = scmp.lt.s32.totalorder %s52, 0
    %s54 = scalar_select %p53, %s52, 0
    %p55 = scmp.eq.s32.totalorder 0, 0
    // Predicated region
    $region22: #{tpu_custom_call.1} parent=1 // pred_check
      %p56 = pneg %p55
    $region23: #{tpu_custom_call.1} parent=1 // pred_check_branch
      %58 = sbr.rel (%p56) target = $region25
    $region24: #{tpu_custom_call.1} parent=1 // pred_region
      %vm59 = vcmask 7168
      %60 = vst.msk [vmem:[#allocation2] sm:$0xff] %vm59, 0.0
    $region25: #{tpu_custom_call.1} parent=1 // pred_fallthru
      _
    %v61 = vld [vmem:[#allocation3] sm:$0xff]
    %v62 = vld [vmem:[#allocation6] sm:$0xff]
    %v63 = vld [vmem:[%s2] sm:$0x1]
    %vm64 = vcmask 261120
    %v65 = vsel %vm64, %v61, -inf
    %66 = vmax.xlane.f32.xlu0 %v65
    %v67 = vpop.xlane.xlu0 %66
    %v68 = vsub.f32 %v61, %v67
    %v69 = vmul.f32 %v68, 1.442695
    %v70 = vpow.pop %v69
    %v71 = vsel %vm64, %v70, 0.0
    %72 = vadd.xlane.f32.xlu0 %v71
    %v73 = vpop.xlane.xlu0 %72
    %v74 = vlog2.pop %v73
    %v75 = vmul.f32 %v74, 0.6931472
    %v76 = vsub.f32 %v75, %v68
    %v77 = vmul.f32 %v76, %v62
    %v79 = vlaneseq
    %v80 = vshrl.u32 %v79, 7
    %v81 = vsub.s32 0, %v80
    %v82 = vrot.slane %v63, %v81
    %v84 = vmul.f32 %v77, %v82
    %v85 = vsel %vm64, %v84, 0.0
    %86 = vadd.xlane.f32.xlu0 %v85
    %v87 = vpop.xlane.xlu0 %86
    %s88 = sadd.s32 0, 0
    %v89 = vlaneseq
    %v90 = vshrl.u32 %v89, 7
    %s91 = smul.u32 %s88, 8
    %v92 = vstv %s91
    %v93 = vadd.s32 %v90, %v92
    %vm94 = vcmp.lt.s32.totalorder %v93, 8
    %v95 = vsel %vm94, %v87, 0.0
    %v96 = vld [vmem:[#allocation2] sm:$0xff]
    %v97 = vadd.f32 %v96, %v95
    %vm98 = vcmask 7168
    %99 = vst.msk [vmem:[#allocation2] sm:$0xff] %vm98, %v97
    // Predicated region
    $region26: #{tpu_custom_call.1} parent=1 // pred_check
      %p100 = pneg %p55
    $region27: #{tpu_custom_call.1} parent=1 // pred_check_branch
      %102 = sbr.rel (%p100) target = $region29
    $region28: #{tpu_custom_call.1} parent=1 // pred_region
      %v103 = vld [vmem:[#allocation2] sm:$0xff]
      %v104 = vsel %vm98, %v103, 0.0
      %105 = vadd.xlane.f32.xlu0 %v104
      %v106 = vpop.xlane.xlu0 %105
      %v107 = vrot.slane %v106, 4
      %v108 = vadd.f32 %v106, %v107
      %v109 = vrot.slane %v108, 2
      %v110 = vadd.f32 %v108, %v109
      %v111 = vrot.slane %v110, 1
      %v112 = vadd.f32 %v110, %v111
      %s113 = vtos %v112
      %s114 = smul.f32 %s113, 0.125
      %v115 = vstv %s114
      %116 = vst [vmem:[#allocation8] sm:$0xff] %v115
    $region29: #{tpu_custom_call.1} parent=1 // pred_fallthru
      _
    // Predicated region
    $region30: #{tpu_custom_call.1} parent=1 // pred_check
      _
    $region31: #{tpu_custom_call.1} parent=1 // pred_check_branch
      %118 = sbr.rel (0) target = $region33
    $region32: #{tpu_custom_call.1} parent=1 // pred_region
      %s120 = ssub.s32 128, 128
      %121 = vsyncadd [#allocation5], %s120
      %s123 = sshll.u32 [#allocation8], 4
      %s124 = int_to_ptr.vmem [resolvable:$true] %s123
      %126 = dma.vmem_to_hbm [thread:$0]  %s124, 128, %s3, [#allocation5]
    $region33: #{tpu_custom_call.1} parent=1 // pred_fallthru
      _
    // Predicated region
    $region34: #{tpu_custom_call.1} parent=1 // pred_check
      _
    $region35: #{tpu_custom_call.1} parent=1 // pred_check_branch
      %128 = sbr.rel (0) target = $region37
    $region36: #{tpu_custom_call.1} parent=1 // pred_region
      %129 = dma.done [#allocation5], 128
    $region37: #{tpu_custom_call.1} parent=1 // pred_fallthru
      _
    %130 = vsyncpa [#allocation4], 1
    %131 = vsyncpa [#allocation7], 1
    %132 = vsyncpa [#allocation5], 1

</llo_original>
